<compile_context>
chip_gen: v7x
topology: tpu7x:2x2x1
jax: 0.10.0
libtpu: 0.0.40
codegen_flags: <defaults>
</compile_context>

<pallas_src>
import jax
import jax.numpy as jnp
from jax.experimental import pallas as pl
from jax.experimental.pallas import tpu as pltpu

EPS = 1e-5
AFFINE = True


def _block_targets():
    """(target block bytes, vmem limit bytes) — generation aware."""
    vmem = 64 * 1024 * 1024
    try:
        info = pltpu.get_tpu_info()
        vmem = getattr(info, "vmem_capacity_bytes", vmem) or vmem
    except Exception:
        pass
    if vmem >= 96 * 1024 * 1024:                 # v5e / v6e: 128 MiB VMEM
        return 4 * 1024 * 1024, 64 * 1024 * 1024
    return 2 * 1024 * 1024, 40 * 1024 * 1024     # v7x: 64 MiB VMEM


def _pick_batch_tile(batch, per_row_bytes, target_bytes):
    """Batch tile: <= target block bytes, >= 2 grid steps when the batch allows,
    and either a multiple of 8 or the full batch (keeps the 2-D stat output
    blocks compatible with the (8,128) block-shape rule)."""
    cap = max(1, target_bytes // max(per_row_bytes, 1))
    tb = min(batch, cap)
    if batch > 1:
        tb = min(tb, pl.cdiv(batch, 2))          # keep >= 2 grid steps
    if tb != batch:
        tb = max(8, (tb // 8) * 8)               # sublane-aligned stat blocks
        tb = min(tb, batch)
    return tb


# ------------------------------------------------------------------ kernels
def _revin_norm_kernel(x_ref, w_ref, b_ref, y_ref, mean_ref, std_ref):
    # x_ref / y_ref : (TB, L, C)   w_ref / b_ref : (1, C)
    # mean_ref / std_ref : (TB, C)
    xf = x_ref[...].astype(jnp.float32)
    mean = jnp.mean(xf, axis=1)                          # (TB, C)
    meansq = jnp.mean(xf * xf, axis=1)                   # (TB, C)
    # One-pass variance (no full-block centered temporary); clamp fp noise.
    var = jnp.maximum(meansq - mean * mean, 0.0)
    stdev = jnp.sqrt(var + EPS)
    rstd = 1.0 / (stdev + EPS)                           # tiny per-channel vector
    if AFFINE:
        scale = w_ref[...] * rstd                        # (TB, C)
        offset = b_ref[...] - mean * scale               # (TB, C)
    else:
        scale = rstd
        offset = -mean * scale
    # Per-element pass is a single FMA over x.
    y_ref[...] = (xf * scale[:, None, :] + offset[:, None, :]).astype(y_ref.dtype)
    mean_ref[...] = mean.astype(mean_ref.dtype)
    std_ref[...] = stdev.astype(std_ref.dtype)


def _revin_denorm_kernel(x_ref, mean_ref, std_ref, w_ref, b_ref, y_ref):
    # x_ref / y_ref : (TB, L, C)   mean_ref / std_ref : (TB, C)   w/b : (1, C)
    xf = x_ref[...].astype(jnp.float32)
    mean = mean_ref[...]
    stdev = std_ref[...]
    if AFFINE:
        # (x - b) / (w + eps^2) * std + mean  ==  x * s + (mean - b * s)
        s = stdev / (w_ref[...] + EPS * EPS)
        o = mean - b_ref[...] * s
    else:
        s = stdev
        o = mean
    y_ref[...] = (xf * s[:, None, :] + o[:, None, :]).astype(y_ref.dtype)


# ----------------------------------------------------------------- wrappers
def revin_norm(x, weight, bias):
    """x: [B, L, C]; weight, bias: [C].  Returns (y, mean, stdev); stats [B, 1, C]."""
    B, L, C = x.shape
    target_bytes, vmem_limit = _block_targets()
    tb = _pick_batch_tile(B, L * C * 4, target_bytes)
    grid = (pl.cdiv(B, tb),)
    w2 = weight.reshape(1, C).astype(jnp.float32)
    b2 = bias.reshape(1, C).astype(jnp.float32)

    y, mean, stdev = pl.pallas_call(
        _revin_norm_kernel,
        out_shape=(
            jax.ShapeDtypeStruct((B, L, C), x.dtype),
            jax.ShapeDtypeStruct((B, C), jnp.float32),
            jax.ShapeDtypeStruct((B, C), jnp.float32),
        ),
        grid=grid,
        in_specs=[
            pl.BlockSpec((tb, L, C), lambda i: (i, 0, 0)),
            pl.BlockSpec((1, C), lambda i: (0, 0)),
            pl.BlockSpec((1, C), lambda i: (0, 0)),
        ],
        out_specs=(
            pl.BlockSpec((tb, L, C), lambda i: (i, 0, 0)),
            pl.BlockSpec((tb, C), lambda i: (i, 0)),
            pl.BlockSpec((tb, C), lambda i: (i, 0)),
        ),
        compiler_params=pltpu.CompilerParams(
            dimension_semantics=("parallel",),
            vmem_limit_bytes=vmem_limit),
    )(x, w2, b2)
    # Module stores stats with keepdim=True: [B, 1, C].  Reshape is free.
    return y, mean.reshape(B, 1, C), stdev.reshape(B, 1, C)


def revin_denorm(x, mean, stdev, weight, bias):
    """x: [B, L, C]; mean, stdev: [B, 1, C]; weight, bias: [C]."""
    B, L, C = x.shape
    target_bytes, vmem_limit = _block_targets()
    tb = _pick_batch_tile(B, L * C * 4, target_bytes)
    grid = (pl.cdiv(B, tb),)
    w2 = weight.reshape(1, C).astype(jnp.float32)
    b2 = bias.reshape(1, C).astype(jnp.float32)
    mean2 = mean.reshape(B, C).astype(jnp.float32)    # drop the size-1 dim (free)
    std2 = stdev.reshape(B, C).astype(jnp.float32)

    return pl.pallas_call(
        _revin_denorm_kernel,
        out_shape=jax.ShapeDtypeStruct((B, L, C), x.dtype),
        grid=grid,
        in_specs=[
            pl.BlockSpec((tb, L, C), lambda i: (i, 0, 0)),
            pl.BlockSpec((tb, C), lambda i: (i, 0)),
            pl.BlockSpec((tb, C), lambda i: (i, 0)),
            pl.BlockSpec((1, C), lambda i: (0, 0)),
            pl.BlockSpec((1, C), lambda i: (0, 0)),
        ],
        out_specs=pl.BlockSpec((tb, L, C), lambda i: (i, 0, 0)),
        compiler_params=pltpu.CompilerParams(
            dimension_semantics=("parallel",),
            vmem_limit_bytes=vmem_limit),
    )(x, mean2, std2, w2, b2)


# ---------------------------------------------------------------- reference
def _revin_norm_ref(x, weight, bias):
    mean = jnp.mean(x, axis=1, keepdims=True)
    var = jnp.mean((x - mean) ** 2, axis=1, keepdims=True)   # unbiased=False
    stdev = jnp.sqrt(var + EPS)
    y = (x - mean) / (stdev + EPS)
    y = y * weight + bias
    return y, mean, stdev


def _revin_denorm_ref(x, mean, stdev, weight, bias):
    x = (x - bias) / (weight + EPS * EPS)
    return x * stdev + mean


def _check(B, L, C, key):
    kx, = jax.random.split(key, 1)
    x = jax.random.normal(kx, (B, L, C), dtype=jnp.float32) * 3.0 + 1.5
    # Non-trivial affine params (the module initializes ones/zeros, but after
    # training they are arbitrary) so the affine path is actually exercised.
    affine_weight = 1.0 + 0.1 * jnp.arange(C, dtype=jnp.float32)
    affine_bias = 0.05 * jnp.arange(C, dtype=jnp.float32) - 0.1

    y, mean, stdev = revin_norm(x, affine_weight, affine_bias)
    x_rec = revin_denorm(y, mean, stdev, affine_weight, affine_bias)
    jax.block_until_ready((y, mean, stdev, x_rec))

    y_ref, mean_ref, std_ref = _revin_norm_ref(x, affine_weight, affine_bias)
    x_rec_ref = _revin_denorm_ref(y_ref, mean_ref, std_ref, affine_weight, affine_bias)
    assert jnp.allclose(mean, mean_ref, atol=1e-5), "mean mismatch"
    assert jnp.allclose(stdev, std_ref, atol=1e-5), "stdev mismatch"
    assert jnp.allclose(y, y_ref, atol=2e-5), "norm mismatch"
    assert jnp.allclose(x_rec, x_rec_ref, atol=1e-4), "denorm mismatch"
    assert jnp.allclose(x_rec, x, atol=1e-3), "round-trip mismatch"


if __name__ == "__main__":
    key = jax.random.PRNGKey(0)
    k0, k1 = jax.random.split(key)
    _check(B=2, L=16, C=4, key=k0)    # tiny shape from the module config
    _check(B=12, L=128, C=8, key=k1)  # exercises cdiv tiling + padded last block
    print("KERNEL_OK")
</pallas_src>

<mosaic_0001>
module attributes {stable_mosaic.version = 11 : i64} {
  func.func @_revin_norm_kernel(%arg0: i32, %arg1: memref<2x16x4xf32, #tpu.memory_space<vmem>>, %arg2: memref<1x4xf32, #tpu.memory_space<vmem>>, %arg3: memref<1x4xf32, #tpu.memory_space<vmem>>, %arg4: memref<2x16x4xf32, #tpu.memory_space<vmem>>, %arg5: memref<2x4xf32, #tpu.memory_space<vmem>>, %arg6: memref<2x4xf32, #tpu.memory_space<vmem>>) attributes {dimension_semantics = [#tpu.dimension_semantics<parallel>], iteration_bounds = array<i64: 1>, scalar_prefetch = 0 : i64, scratch_operands = 0 : i64, tpu.core_type = #tpu.core_type<tc>, window_params = [{transform_indices = @transform_0, window_bounds = array<i64: 2, 16, 4>}, {pipeline_mode = #tpu.pipeline_mode<synchronous>, transform_indices = @transform_1, window_bounds = array<i64: 1, 4>}, {pipeline_mode = #tpu.pipeline_mode<synchronous>, transform_indices = @transform_2, window_bounds = array<i64: 1, 4>}, {transform_indices = @transform_3, window_bounds = array<i64: 2, 16, 4>}, {transform_indices = @transform_4, window_bounds = array<i64: 2, 4>}, {transform_indices = @transform_5, window_bounds = array<i64: 2, 4>}]} {
    %c0 = arith.constant 0 : index
    %c0_0 = arith.constant 0 : index
    %c0_1 = arith.constant 0 : index
    %0 = vector.load %arg1[%c0, %c0_0, %c0_1] : memref<2x16x4xf32, #tpu.memory_space<vmem>>, vector<2x16x4xf32>
    %cst = arith.constant dense<0.000000e+00> : vector<2x4xf32>
    %1 = vector.multi_reduction <add>, %0, %cst [1] : vector<2x16x4xf32> to vector<2x4xf32>
    %cst_2 = arith.constant 1.600000e+01 : f32
    %2 = vector.broadcast %cst_2 : f32 to vector<2x4xf32>
    %3 = arith.divf %1, %2 : vector<2x4xf32>
    %4 = arith.mulf %0, %0 : vector<2x16x4xf32>
    %cst_3 = arith.constant dense<0.000000e+00> : vector<2x4xf32>
    %5 = vector.multi_reduction <add>, %4, %cst_3 [1] : vector<2x16x4xf32> to vector<2x4xf32>
    %cst_4 = arith.constant 1.600000e+01 : f32
    %6 = vector.broadcast %cst_4 : f32 to vector<2x4xf32>
    %7 = arith.divf %5, %6 : vector<2x4xf32>
    %8 = arith.mulf %3, %3 : vector<2x4xf32>
    %9 = arith.subf %7, %8 : vector<2x4xf32>
    %cst_5 = arith.constant 0.000000e+00 : f32
    %10 = vector.broadcast %cst_5 : f32 to vector<2x4xf32>
    %11 = arith.maximumf %9, %10 : vector<2x4xf32>
    %cst_6 = arith.constant 9.99999974E-6 : f32
    %12 = vector.broadcast %cst_6 : f32 to vector<2x4xf32>
    %13 = arith.addf %11, %12 : vector<2x4xf32>
    %14 = math.sqrt %13 : vector<2x4xf32>
    %cst_7 = arith.constant 9.99999974E-6 : f32
    %15 = vector.broadcast %cst_7 : f32 to vector<2x4xf32>
    %16 = arith.addf %14, %15 : vector<2x4xf32>
    %cst_8 = arith.constant 1.000000e+00 : f32
    %17 = vector.broadcast %cst_8 : f32 to vector<2x4xf32>
    %18 = arith.divf %17, %16 : vector<2x4xf32>
    %c0_9 = arith.constant 0 : index
    %c0_10 = arith.constant 0 : index
    %19 = vector.load %arg2[%c0_9, %c0_10] : memref<1x4xf32, #tpu.memory_space<vmem>>, vector<1x4xf32>
    %20 = vector.broadcast %19 : vector<1x4xf32> to vector<2x4xf32>
    %21 = arith.mulf %20, %18 : vector<2x4xf32>
    %c0_11 = arith.constant 0 : index
    %c0_12 = arith.constant 0 : index
    %22 = vector.load %arg3[%c0_11, %c0_12] : memref<1x4xf32, #tpu.memory_space<vmem>>, vector<1x4xf32>
    %23 = arith.mulf %3, %21 : vector<2x4xf32>
    %24 = vector.broadcast %22 : vector<1x4xf32> to vector<2x4xf32>
    %25 = arith.subf %24, %23 : vector<2x4xf32>
    %26 = vector.shape_cast %21 : vector<2x4xf32> to vector<2x1x4xf32>
    %27 = vector.broadcast %26 : vector<2x1x4xf32> to vector<2x16x4xf32>
    %28 = arith.mulf %0, %27 : vector<2x16x4xf32>
    %29 = vector.shape_cast %25 : vector<2x4xf32> to vector<2x1x4xf32>
    %30 = vector.broadcast %29 : vector<2x1x4xf32> to vector<2x16x4xf32>
    %31 = arith.addf %28, %30 : vector<2x16x4xf32>
    %c0_13 = arith.constant 0 : index
    %c0_14 = arith.constant 0 : index
    %c0_15 = arith.constant 0 : index
    %32 = vector.load %arg4[%c0_13, %c0_14, %c0_15] : memref<2x16x4xf32, #tpu.memory_space<vmem>>, vector<2x16x4xf32>
    tpu.vector_store %arg4[%c0_13, %c0_14, %c0_15], %31 {strides = array<i32>} : memref<2x16x4xf32, #tpu.memory_space<vmem>>, vector<2x16x4xf32>,
    %c0_16 = arith.constant 0 : index
    %c0_17 = arith.constant 0 : index
    %33 = vector.load %arg5[%c0_16, %c0_17] : memref<2x4xf32, #tpu.memory_space<vmem>>, vector<2x4xf32>
    tpu.vector_store %arg5[%c0_16, %c0_17], %3 {strides = array<i32>} : memref<2x4xf32, #tpu.memory_space<vmem>>, vector<2x4xf32>,
    %c0_18 = arith.constant 0 : index
    %c0_19 = arith.constant 0 : index
    %34 = vector.load %arg6[%c0_18, %c0_19] : memref<2x4xf32, #tpu.memory_space<vmem>>, vector<2x4xf32>
    tpu.vector_store %arg6[%c0_18, %c0_19], %14 {strides = array<i32>} : memref<2x4xf32, #tpu.memory_space<vmem>>, vector<2x4xf32>,
    return
  }
  func.func @transform_0(%arg0: i32) -> (i32, i32, i32) {
    %c0_i32 = arith.constant 0 : i32
    %c0_i32_0 = arith.constant 0 : i32
    %c0_i32_1 = arith.constant 0 : i32
    return %arg0, %c0_i32, %c0_i32_0 : i32, i32, i32
  }
  func.func @transform_1(%arg0: i32) -> (i32, i32) {
    %c0_i32 = arith.constant 0 : i32
    %c0_i32_0 = arith.constant 0 : i32
    %c0_i32_1 = arith.constant 0 : i32
    return %c0_i32, %c0_i32_0 : i32, i32
  }
  func.func @transform_2(%arg0: i32) -> (i32, i32) {
    %c0_i32 = arith.constant 0 : i32
    %c0_i32_0 = arith.constant 0 : i32
    %c0_i32_1 = arith.constant 0 : i32
    return %c0_i32, %c0_i32_0 : i32, i32
  }
  func.func @transform_3(%arg0: i32) -> (i32, i32, i32) {
    %c0_i32 = arith.constant 0 : i32
    %c0_i32_0 = arith.constant 0 : i32
    %c0_i32_1 = arith.constant 0 : i32
    return %arg0, %c0_i32, %c0_i32_0 : i32, i32, i32
  }
  func.func @transform_4(%arg0: i32) -> (i32, i32) {
    %c0_i32 = arith.constant 0 : i32
    %c0_i32_0 = arith.constant 0 : i32
    return %arg0, %c0_i32 : i32, i32
  }
  func.func @transform_5(%arg0: i32) -> (i32, i32) {
    %c0_i32 = arith.constant 0 : i32
    %c0_i32_0 = arith.constant 0 : i32
    return %arg0, %c0_i32 : i32, i32
  }
}

</mosaic_0001>

<llo_original>
// kernel: tpu_custom_call.1
$region0: #{tpu_custom_call.1}
  #allocation0 [shape = 'u32[]', space=smem, size = 0x4, offset = 0x4, fixed_abs, tag = 'smem constant byte address 0x4 - core index']
  #allocation1 [shape = 'u32[144,128]{1,0:T(1,128)}', space=vmem, size = 0x12000, scoped, tag = 'internal scratch']
  %s0 = inlined_call_operand.vmem [shape: f32[2,16,4], index: 0, kind: input, shape index: {}]
  %s1 = inlined_call_operand.vmem [shape: f32[1,4], index: 1, kind: input, shape index: {}]
  %s2 = inlined_call_operand.vmem [shape: f32[1,4], index: 2, kind: input, shape index: {}]
  %s3 = inlined_call_operand.vmem [shape: f32[2,16,4], index: 3, kind: output, shape index: {0}]
  %s4 = inlined_call_operand.hbm [shape: f32[2,4], index: 4, kind: output, shape index: {1}]
  %s5 = inlined_call_operand.hbm [shape: f32[2,4], index: 5, kind: output, shape index: {2}]
  %6 = xla_tuple %s3, %s4, %s5
  %s7 = sld [smem:[#allocation0]]
  $region38: #{tpu_custom_call.1} parent=0
    _
  %s9 = ssub.s32 1, %s7
  %s10 = scalar_select 0, %s9, %s7
  $region1: #{tpu_custom_call.1} parent=0
    #allocation2 [shape = 'u8[1024]{0}', space=vmem, size = 0x400, scoped, tag = 'output window, operand 1, single buffered']
    #allocation3 [shape = 's32[1]{0}', space=sflag, size = 0x4, scoped, tag = 'scoped memory for tpu_custom_call.1']
    #allocation4 [shape = 'u8[1024]{0}', space=vmem, size = 0x400, scoped, tag = 'output window, operand 2, single buffered']
    #allocation5 [shape = 's32[1]{0}', space=sflag, size = 0x4, scoped, tag = 'scoped memory for tpu_custom_call.1']
    %11 = vsyncpa [#allocation3], 0
    %12 = vsyncpa [#allocation5], 0
    // Predicated region
    $region2: #{tpu_custom_call.1} parent=1 // pred_check
      _
    $region3: #{tpu_custom_call.1} parent=1 // pred_check_branch
      %14 = sbr.rel (0) target = $region5
    $region4: #{tpu_custom_call.1} parent=1 // pred_region
      _
    $region5: #{tpu_custom_call.1} parent=1 // pred_fallthru
      _
    // Predicated region
    $region6: #{tpu_custom_call.1} parent=1 // pred_check
      _
    $region7: #{tpu_custom_call.1} parent=1 // pred_check_branch
      %16 = sbr.rel (0) target = $region9
    $region8: #{tpu_custom_call.1} parent=1 // pred_region
      _
    $region9: #{tpu_custom_call.1} parent=1 // pred_fallthru
      _
    // Predicated region
    $region10: #{tpu_custom_call.1} parent=1 // pred_check
      _
    $region11: #{tpu_custom_call.1} parent=1 // pred_check_branch
      %18 = sbr.rel (0) target = $region13
    $region12: #{tpu_custom_call.1} parent=1 // pred_region
      _
    $region13: #{tpu_custom_call.1} parent=1 // pred_fallthru
      _
    %v19 = vld [vmem:[%s0] sm:$0xff]
    %v20 = vld [vmem:[%s0 + $0x8] sm:$0xff]
    %v21 = vld [vmem:[%s0 + $0x10] sm:$0xff]
    %v22 = vld [vmem:[%s0 + $0x18] sm:$0xff]
    %vm23 = vcmask 31744
    %v24 = vsel %vm23, %v19, 0.0
    %v25 = vsel %vm23, %v20, 0.0
    %v26 = vadd.f32 %v24, %v25
    %v27 = vrot.slane %v26, 4
    %v28 = vadd.f32 %v26, %v27
    %v29 = vrot.slane %v28, 2
    %v30 = vadd.f32 %v28, %v29
    %v31 = vrot.slane %v30, 1
    %v32 = vadd.f32 %v30, %v31
    %v33 = vsel %vm23, %v21, 0.0
    %v34 = vsel %vm23, %v22, 0.0
    %v35 = vadd.f32 %v33, %v34
    %v36 = vrot.slane %v35, 4
    %v37 = vadd.f32 %v35, %v36
    %v38 = vrot.slane %v37, 2
    %v39 = vadd.f32 %v37, %v38
    %v40 = vrot.slane %v39, 1
    %v41 = vadd.f32 %v39, %v40
    %v42 = vrcp.pop 16.0
    %v43 = vmul.f32 %v32, %v42
    %v44 = vmul.f32 %v41, %v42
    %v45 = vmul.f32 %v19, %v19
    %v46 = vmul.f32 %v20, %v20
    %v47 = vmul.f32 %v21, %v21
    %v48 = vmul.f32 %v22, %v22
    %v49 = vsel %vm23, %v45, 0.0
    %v50 = vsel %vm23, %v46, 0.0
    %v51 = vadd.f32 %v49, %v50
    %v52 = vrot.slane %v51, 4
    %v53 = vadd.f32 %v51, %v52
    %v54 = vrot.slane %v53, 2
    %v55 = vadd.f32 %v53, %v54
    %v56 = vrot.slane %v55, 1
    %v57 = vadd.f32 %v55, %v56
    %v58 = vsel %vm23, %v47, 0.0
    %v59 = vsel %vm23, %v48, 0.0
    %v60 = vadd.f32 %v58, %v59
    %v61 = vrot.slane %v60, 4
    %v62 = vadd.f32 %v60, %v61
    %v63 = vrot.slane %v62, 2
    %v64 = vadd.f32 %v62, %v63
    %v65 = vrot.slane %v64, 1
    %v66 = vadd.f32 %v64, %v65
    %v67 = vmul.f32 %v57, %v42
    %v68 = vmul.f32 %v66, %v42
    %v69 = vmul.f32 %v43, %v43
    %v70 = vmul.f32 %v44, %v44
    %v71 = vsub.f32 %v67, %v69
    %v72 = vsub.f32 %v68, %v70
    %v73 = vmax.f32 %v71, 0.0
    %v74 = vmax.f32 %v72, 0.0
    %v75 = vadd.f32 %v73, 1e-05
    %v76 = vadd.f32 %v74, 1e-05
    %v77 = vrsqrt.pop %v75
    %v78 = vmul.f32 %v75, %v77
    %vm79 = vcmp.eq.f32.partialorder %v75, inf
    %v80 = vsel %vm79, %v75, %v78
    %vm81 = vcmp.eq.f32.partialorder %v75, 0.0
    %v82 = vand.u32 %v75, 2147483648
    %v83 = vsel %vm81, %v82, %v80
    %v84 = vrsqrt.pop %v76
    %v85 = vmul.f32 %v76, %v84
    %vm86 = vcmp.eq.f32.partialorder %v76, inf
    %v87 = vsel %vm86, %v76, %v85
    %vm88 = vcmp.eq.f32.partialorder %v76, 0.0
    %v89 = vand.u32 %v76, 2147483648
    %v90 = vsel %vm88, %v89, %v87
    %v91 = vadd.f32 %v83, 1e-05
    %v92 = vadd.f32 %v90, 1e-05
    %v93 = vrcp.pop %v91
    %v94 = vmul.f32 1.0, %v93
    %v95 = vrcp.pop %v92
    %v96 = vmul.f32 1.0, %v95
    %v97 = vld [vmem:[%s1] sm:$0x1]
    %v99 = vlaneseq
    %v100 = vshrl.u32 %v99, 7
    %v101 = vsub.s32 0, %v100
    %v102 = vrot.slane %v97, %v101
    %vm106 = vcmask 1041409
    %v107 = vsel %vm106, %v96, %v94
    %v109 = vmul.f32 %v102, %v107
    %v110 = vld [vmem:[%s2] sm:$0x1]
    %v112 = vrot.slane %v109, 1
    %v115 = vmul.f32 %v43, %v109
    %v116 = vmul.f32 %v44, %v112
    %v118 = vlaneseq
    %v119 = vshrl.u32 %v118, 7
    %v120 = vsub.s32 0, %v119
    %v121 = vrot.slane %v110, %v120
    %v125 = vrot.slane %v116, 7
    %v126 = vsel %vm106, %v125, %v115
    %v128 = vsub.f32 %v121, %v126
    %v130 = vunpack.c.l.s4 1966171168
    %v131 = vunpack.c.0.s8 %v130
    %v132 = vlaneseq
    %v133 = vshrl.u32 %v132, 7
    %v134 = vsub.s32 %v131, %v133
    %v135 = vrot.slane %v109, %v134
    %v136 = vcombine.high %v135, %v135
    %v138 = vunpack.c.l.s4 1966171168
    %v139 = vunpack.c.0.s8 %v138
    %v140 = vlaneseq
    %v141 = vshrl.u32 %v140, 7
    %v142 = vsub.s32 %v139, %v141
    %v143 = vrot.slane %v135, %v142
    %v145 = vunpack.c.l.s4 1966171168
    %v146 = vunpack.c.0.s8 %v145
    %v147 = vlaneseq
    %v148 = vshrl.u32 %v147, 7
    %v149 = vsub.s32 %v146, %v148
    %v150 = vrot.slane %v136, %v149
    %v151 = vlaneseq
    %v152 = vshrl.u32 %v151, 7
    %v153 = vsub.s32 0, %v152
    %v154 = vrot.slane %v143, %v153
    %v155 = vlaneseq
    %v156 = vshrl.u32 %v155, 7
    %v157 = vsub.s32 0, %v156
    %v158 = vrot.slane %v150, %v157
    %v161 = vmul.f32 %v19, %v154
    %v162 = vmul.f32 %v20, %v154
    %v163 = vmul.f32 %v21, %v158
    %v164 = vmul.f32 %v22, %v158
    %v167 = vunpack.c.l.s4 1966171168
    %v168 = vunpack.c.0.s8 %v167
    %v169 = vlaneseq
    %v170 = vshrl.u32 %v169, 7
    %v171 = vsub.s32 %v168, %v170
    %v172 = vrot.slane %v128, %v171
    %v173 = vcombine.high %v172, %v172
    %v175 = vunpack.c.l.s4 1966171168
    %v176 = vunpack.c.0.s8 %v175
    %v177 = vlaneseq
    %v178 = vshrl.u32 %v177, 7
    %v179 = vsub.s32 %v176, %v178
    %v180 = vrot.slane %v172, %v179
    %v182 = vunpack.c.l.s4 1966171168
    %v183 = vunpack.c.0.s8 %v182
    %v184 = vlaneseq
    %v185 = vshrl.u32 %v184, 7
    %v186 = vsub.s32 %v183, %v185
    %v187 = vrot.slane %v173, %v186
    %v188 = vlaneseq
    %v189 = vshrl.u32 %v188, 7
    %v190 = vsub.s32 0, %v189
    %v191 = vrot.slane %v180, %v190
    %v192 = vlaneseq
    %v193 = vshrl.u32 %v192, 7
    %v194 = vsub.s32 0, %v193
    %v195 = vrot.slane %v187, %v194
    %v198 = vadd.f32 %v161, %v191
    %v199 = vadd.f32 %v162, %v191
    %v200 = vadd.f32 %v163, %v195
    %v201 = vadd.f32 %v164, %v195
    %202 = vst.msk [vmem:[%s3] sm:$0xff] %vm23, %v198
    %203 = vst.msk [vmem:[%s3 + $0x8] sm:$0xff] %vm23, %v199
    %204 = vst.msk [vmem:[%s3 + $0x10] sm:$0xff] %vm23, %v200
    %205 = vst.msk [vmem:[%s3 + $0x18] sm:$0xff] %vm23, %v201
    %v208 = vsel %vm106, %v44, %v43
    %vm210 = vcmask 25600
    %211 = vst.msk [vmem:[#allocation2] sm:$0x3] %vm210, %v208
    %v214 = vsel %vm106, %v90, %v83
    %216 = vst.msk [vmem:[#allocation4] sm:$0x3] %vm210, %v214
    // Predicated region
    $region14: #{tpu_custom_call.1} parent=1 // pred_check
      _
    $region15: #{tpu_custom_call.1} parent=1 // pred_check_branch
      %218 = sbr.rel (0) target = $region17
    $region16: #{tpu_custom_call.1} parent=1 // pred_region
      _
    $region17: #{tpu_custom_call.1} parent=1 // pred_fallthru
      _
    // Predicated region
    $region18: #{tpu_custom_call.1} parent=1 // pred_check
      _
    $region19: #{tpu_custom_call.1} parent=1 // pred_check_branch
      %220 = sbr.rel (0) target = $region21
    $region20: #{tpu_custom_call.1} parent=1 // pred_region
      %s222 = ssub.s32 32, 32
      %223 = vsyncadd [#allocation3], %s222
      %s225 = sshll.u32 [#allocation2], 4
      %s226 = int_to_ptr.vmem [resolvable:$true] %s225
      %228 = dma.vmem_to_hbm [thread:$0]  %s226, 32, %s4, [#allocation3]
    $region21: #{tpu_custom_call.1} parent=1 // pred_fallthru
      _
    // Predicated region
    $region22: #{tpu_custom_call.1} parent=1 // pred_check
      _
    $region23: #{tpu_custom_call.1} parent=1 // pred_check_branch
      %230 = sbr.rel (0) target = $region25
    $region24: #{tpu_custom_call.1} parent=1 // pred_region
      %s232 = ssub.s32 32, 32
      %233 = vsyncadd [#allocation5], %s232
      %s235 = sshll.u32 [#allocation4], 4
      %s236 = int_to_ptr.vmem [resolvable:$true] %s235
      %238 = dma.vmem_to_hbm [thread:$0]  %s236, 32, %s5, [#allocation5]
    $region25: #{tpu_custom_call.1} parent=1 // pred_fallthru
      _
    // Predicated region
    $region26: #{tpu_custom_call.1} parent=1 // pred_check
      _
    $region27: #{tpu_custom_call.1} parent=1 // pred_check_branch
      %240 = sbr.rel (0) target = $region29
    $region28: #{tpu_custom_call.1} parent=1 // pred_region
      _
    $region29: #{tpu_custom_call.1} parent=1 // pred_fallthru
      _
    // Predicated region
    $region30: #{tpu_custom_call.1} parent=1 // pred_check
      _
    $region31: #{tpu_custom_call.1} parent=1 // pred_check_branch
      %242 = sbr.rel (0) target = $region33
    $region32: #{tpu_custom_call.1} parent=1 // pred_region
      %243 = dma.done [#allocation3], 32
    $region33: #{tpu_custom_call.1} parent=1 // pred_fallthru
      _
    // Predicated region
    $region34: #{tpu_custom_call.1} parent=1 // pred_check
      _
    $region35: #{tpu_custom_call.1} parent=1 // pred_check_branch
      %245 = sbr.rel (0) target = $region37
    $region36: #{tpu_custom_call.1} parent=1 // pred_region
      %246 = dma.done [#allocation5], 32
    $region37: #{tpu_custom_call.1} parent=1 // pred_fallthru
      _
    %247 = vsyncpa [#allocation3], 1
    %248 = vsyncpa [#allocation5], 1

</llo_original>
